<compile_context>
chip_gen: v5e
topology: v5e:2x2
jax: 0.10.0
libtpu: 0.0.40
codegen_flags: <defaults>
</compile_context>

<pallas_src>
import functools

import jax
import jax.numpy as jnp
from jax.experimental import pallas as pl
from jax.experimental.pallas import tpu as pltpu

PRED_COLS = ['reactivity', 'deg_Mg_pH10', 'deg_Mg_50C', 'deg_pH10', 'deg_50C']
NUM_COLS = len(PRED_COLS)
LEN_SCORED = 68

_LANE = 128      # TPU lane width
_SUBLANE = 8     # f32 sublane tiling


def _round_up(x, m):
    return ((x + m - 1) // m) * m


def _colwise_sse_kernel(yhat_ref, y_ref, sw_ref, out_ref, *,
                        batch, tile_b, mask_batch):
    """Partial sums of sw[b] * (yhat - y)^2 for one batch tile, kept per lane.

    yhat_ref / y_ref : (tile_b, lane_blk) native dtype; lanes = flattened (l, c)
    sw_ref           : (tile_b, 1) f32 per-sample weights
    out_ref          : (1, 8, lane_blk) f32 per-lane partial sums (sublane-replicated)
    """
    # Cast after the DMA so bf16 inputs move half the HBM bytes.
    d = yhat_ref[...].astype(jnp.float32) - y_ref[...].astype(jnp.float32)
    wsq = d * d * sw_ref[...]                       # sw broadcasts over the lane axis

    if mask_batch:
        # Last batch tile may run past B: discard the padded (garbage) rows.
        i = pl.program_id(0)
        row = jax.lax.broadcasted_iota(jnp.int32, wsq.shape, 0)
        wsq = jnp.where(row < (batch - i * tile_b), wsq, 0.0)

    per_lane = jnp.sum(wsq, axis=0, keepdims=True)  # (1, lane_blk), XLU reduction
    out_ref[...] = jnp.broadcast_to(per_lane[None], out_ref.shape)


def colwise_loss(yhat, y, column_weight=None, sample_weight=None, *, tile_b=512):
    """Pallas implementation of ColWiseLoss.forward (base_loss = weighted RMSE).

    yhat, y: (B, L, C) with C == 5 and L >= 68, any float dtype (bf16/f32).
    column_weight: optional (C,) weights.  sample_weight: optional (B,) weights.
    Returns a scalar f32.
    """
    B, L, C = yhat.shape
    assert C == NUM_COLS and L >= LEN_SCORED
    assert y.shape == yhat.shape

    if column_weight is None:
        column_weight = jnp.ones((C,), jnp.float32)
    if sample_weight is None:
        sample_weight = jnp.ones((B,), jnp.float32)
    cw = jnp.asarray(column_weight, jnp.float32)
    sw = jnp.asarray(sample_weight, jnp.float32)
    # NOTE: if sum(sample_weight) == 0 this produces NaN, matching the reference.

    lc = L * C
    scored_lanes = LEN_SCORED * C                       # 340 lanes actually scored
    lane_blk = _round_up(scored_lanes, _LANE)           # 384 (multiple of 128)
    if lane_blk > lc:                                   # 68 <= L <= 76 -> full width
        lane_blk = lc

    # Batch tile: full batch when small (always a legal block), otherwise a
    # sublane-aligned cap so VMEM stays small on every TPU generation.
    tb = B if B <= tile_b else _round_up(tile_b, _SUBLANE)
    n_bt = pl.cdiv(B, tb)
    mask_batch = (B % tb) != 0

    # Layout-preserving reshape (no HBM copy, no dtype change).
    yhat2 = jnp.reshape(yhat, (B, lc))
    y2 = jnp.reshape(y, (B, lc))
    sw2 = sw.reshape(B, 1)

    kernel = functools.partial(_colwise_sse_kernel,
                               batch=B, tile_b=tb, mask_batch=mask_batch)

    partials = pl.pallas_call(
        kernel,
        out_shape=jax.ShapeDtypeStruct((n_bt, _SUBLANE, lane_blk), jnp.float32),
        grid=(n_bt,),
        in_specs=[
            pl.BlockSpec((tb, lane_blk), lambda i: (i, 0)),   # yhat tile
            pl.BlockSpec((tb, lane_blk), lambda i: (i, 0)),   # y tile
            pl.BlockSpec((tb, 1), lambda i: (i, 0)),          # sample weights
        ],
        out_specs=pl.BlockSpec((1, _SUBLANE, lane_blk), lambda i: (i, 0, 0)),
        compiler_params=pltpu.CompilerParams(
            dimension_semantics=("parallel",)),               # independent batch tiles
    )(yhat2, y2, sw2)

    # Tiny epilogue on (n_bt, lane_blk) floats: untangle columns, sqrt, weight, avg.
    per_lane = jnp.sum(partials[:, 0, :], axis=0)             # (lane_blk,)
    sse = per_lane[:scored_lanes].reshape(LEN_SCORED, NUM_COLS).sum(axis=0)  # (C,)
    inv_denom = 1.0 / (jnp.sum(sw) * LEN_SCORED)
    rmse = jnp.sqrt(sse * inv_denom)
    return jnp.sum(rmse * cw) / NUM_COLS


def _colwise_loss_ref(yhat, y, column_weight, sample_weight):
    """Plain-JAX reference mirroring the PyTorch forward (weighted-RMSE base loss)."""
    sw = sample_weight.astype(jnp.float32)
    score = jnp.float32(0.0)
    for i in range(NUM_COLS):
        d = (yhat[:, :LEN_SCORED, i].astype(jnp.float32)
             - y[:, :LEN_SCORED, i].astype(jnp.float32))
        sse = jnp.sum(sw[:, None] * d * d)
        mse = sse / (jnp.sum(sw) * LEN_SCORED)
        s = jnp.sqrt(mse) / NUM_COLS
        s = s * column_weight[i]
        score = score + s
    return score


if __name__ == "__main__":
    key = jax.random.PRNGKey(0)
    k1, k2, k3, k4, k5, k6 = jax.random.split(key, 6)

    # --- main small-shape test: f32, single batch tile --------------------------
    B, L, C = 2, 80, NUM_COLS
    yhat = jax.random.normal(k1, (B, L, C), dtype=jnp.float32)
    y = jax.random.normal(k2, (B, L, C), dtype=jnp.float32)
    column_weight = jnp.array([1.0, 1.0, 1.0, 0.5, 0.5], dtype=jnp.float32)
    sample_weight = jax.random.uniform(k3, (B,), dtype=jnp.float32,
                                       minval=0.5, maxval=1.5)

    out = jax.block_until_ready(colwise_loss(yhat, y, column_weight, sample_weight))
    ref = _colwise_loss_ref(yhat, y, column_weight, sample_weight)
    assert jnp.allclose(out, ref, rtol=1e-5, atol=1e-5), (out, ref)

    # default (None) weights path
    out_d = jax.block_until_ready(colwise_loss(yhat, y))
    ref_d = _colwise_loss_ref(yhat, y, jnp.ones((C,), jnp.float32),
                              jnp.ones((B,), jnp.float32))
    assert jnp.allclose(out_d, ref_d, rtol=1e-5, atol=1e-5), (out_d, ref_d)

    # --- bf16 inputs stay bf16 through the DMA ----------------------------------
    yhat_bf = yhat.astype(jnp.bfloat16)
    y_bf = y.astype(jnp.bfloat16)
    out_bf = jax.block_until_ready(
        colwise_loss(yhat_bf, y_bf, column_weight, sample_weight))
    ref_bf = _colwise_loss_ref(yhat_bf, y_bf, column_weight, sample_weight)
    assert jnp.allclose(out_bf, ref_bf, rtol=1e-4, atol=1e-4), (out_bf, ref_bf)

    # --- multi-tile grid with a partial last batch tile (OpenVaccine L=107) -----
    B2, L2 = 20, 107
    yhat2 = jax.random.normal(k4, (B2, L2, C), dtype=jnp.float32)
    y2 = jax.random.normal(k5, (B2, L2, C), dtype=jnp.float32)
    sw2 = jax.random.uniform(k6, (B2,), dtype=jnp.float32, minval=0.5, maxval=1.5)
    out2 = jax.block_until_ready(
        colwise_loss(yhat2, y2, column_weight, sw2, tile_b=8))
    ref2 = _colwise_loss_ref(yhat2, y2, column_weight, sw2)
    assert jnp.allclose(out2, ref2, rtol=1e-5, atol=1e-5), (out2, ref2)

    print("KERNEL_OK")
</pallas_src>

<mosaic_0001>
module attributes {stable_mosaic.version = 11 : i64} {
  func.func @_colwise_sse_kernel(%arg0: i32, %arg1: memref<2x384xf32, #tpu.memory_space<vmem>>, %arg2: memref<2x384xf32, #tpu.memory_space<vmem>>, %arg3: memref<2x1xf32, #tpu.memory_space<vmem>>, %arg4: memref<1x8x384xf32, #tpu.memory_space<vmem>>) attributes {dimension_semantics = [#tpu.dimension_semantics<parallel>], iteration_bounds = array<i64: 1>, scalar_prefetch = 0 : i64, scratch_operands = 0 : i64, tpu.core_type = #tpu.core_type<tc>, window_params = [{transform_indices = @transform_0, window_bounds = array<i64: 2, 384>}, {transform_indices = @transform_1, window_bounds = array<i64: 2, 384>}, {transform_indices = @transform_2, window_bounds = array<i64: 2, 1>}, {transform_indices = @transform_3, window_bounds = array<i64: 1, 8, 384>}]} {
    %c0 = arith.constant 0 : index
    %c0_0 = arith.constant 0 : index
    %0 = vector.load %arg1[%c0, %c0_0] : memref<2x384xf32, #tpu.memory_space<vmem>>, vector<2x384xf32>
    %c0_1 = arith.constant 0 : index
    %c0_2 = arith.constant 0 : index
    %1 = vector.load %arg2[%c0_1, %c0_2] : memref<2x384xf32, #tpu.memory_space<vmem>>, vector<2x384xf32>
    %2 = arith.subf %0, %1 : vector<2x384xf32>
    %3 = arith.mulf %2, %2 : vector<2x384xf32>
    %c0_3 = arith.constant 0 : index
    %c0_4 = arith.constant 0 : index
    %4 = vector.load %arg3[%c0_3, %c0_4] : memref<2x1xf32, #tpu.memory_space<vmem>>, vector<2x1xf32>
    %5 = vector.broadcast %4 : vector<2x1xf32> to vector<2x384xf32>
    %6 = arith.mulf %3, %5 : vector<2x384xf32>
    %cst = arith.constant dense<0.000000e+00> : vector<384xf32>
    %7 = vector.multi_reduction <add>, %6, %cst [0] : vector<2x384xf32> to vector<384xf32>
    %8 = vector.shape_cast %7 : vector<384xf32> to vector<1x384xf32>
    %9 = vector.shape_cast %8 : vector<1x384xf32> to vector<1x1x384xf32>
    %10 = vector.shape_cast %9 : vector<1x1x384xf32> to vector<1x1x384xf32>
    %11 = vector.broadcast %10 : vector<1x1x384xf32> to vector<1x8x384xf32>
    %c0_5 = arith.constant 0 : index
    %c0_6 = arith.constant 0 : index
    %c0_7 = arith.constant 0 : index
    %12 = vector.load %arg4[%c0_5, %c0_6, %c0_7] : memref<1x8x384xf32, #tpu.memory_space<vmem>>, vector<1x8x384xf32>
    tpu.vector_store %arg4[%c0_5, %c0_6, %c0_7], %11 {strides = array<i32>} : memref<1x8x384xf32, #tpu.memory_space<vmem>>, vector<1x8x384xf32>,
    return
  }
  func.func @transform_0(%arg0: i32) -> (i32, i32) {
    %c0_i32 = arith.constant 0 : i32
    %c0_i32_0 = arith.constant 0 : i32
    return %arg0, %c0_i32 : i32, i32
  }
  func.func @transform_1(%arg0: i32) -> (i32, i32) {
    %c0_i32 = arith.constant 0 : i32
    %c0_i32_0 = arith.constant 0 : i32
    return %arg0, %c0_i32 : i32, i32
  }
  func.func @transform_2(%arg0: i32) -> (i32, i32) {
    %c0_i32 = arith.constant 0 : i32
    %c0_i32_0 = arith.constant 0 : i32
    return %arg0, %c0_i32 : i32, i32
  }
  func.func @transform_3(%arg0: i32) -> (i32, i32, i32) {
    %c0_i32 = arith.constant 0 : i32
    %c0_i32_0 = arith.constant 0 : i32
    %c0_i32_1 = arith.constant 0 : i32
    return %arg0, %c0_i32, %c0_i32_0 : i32, i32, i32
  }
}

</mosaic_0001>

<llo_original>
// kernel: tpu_custom_call.1
$region0: #{tpu_custom_call.1}
  #allocation0 [shape = 'u32[]', space=smem, size = 0x4, offset = 0x4, fixed_abs, tag = 'smem constant byte address 0x4 - core index']
  #allocation1 [shape = 'u32[72,128]{1,0:T(1,128)}', space=vmem, size = 0x9000, scoped, tag = 'internal scratch']
  %s0 = inlined_call_operand.hbm [shape: f32[2,400], index: 0, kind: input, shape index: {}]
  %s1 = inlined_call_operand.hbm [shape: f32[2,400], index: 1, kind: input, shape index: {}]
  %s2 = inlined_call_operand.vmem [shape: f32[2,1], index: 2, kind: input, shape index: {}]
  %s3 = inlined_call_operand.hbm [shape: f32[1,8,384], index: 3, kind: output, shape index: {}]
  %s4 = sld [smem:[#allocation0]]
  $region30: #{tpu_custom_call.1} parent=0
    _
  %s6 = ssub.s32 1, %s4
  %s7 = scalar_select 0, %s6, %s4
  $region1: #{tpu_custom_call.1} parent=0
    #allocation2 [shape = 'u8[3072]{0}', space=vmem, size = 0xc00, scoped, tag = 'input window, operand 0, single buffered']
    #allocation3 [shape = 's32[1]{0}', space=sflag, size = 0x4, scoped, tag = 'scoped memory for tpu_custom_call.1']
    #allocation4 [shape = 's32[1]{0}', space=sflag, size = 0x4, scoped, tag = 'scoped memory for tpu_custom_call.1']
    #allocation5 [shape = 'u8[3072]{0}', space=vmem, size = 0xc00, scoped, tag = 'input window, operand 1, single buffered']
    #allocation6 [shape = 's32[1]{0}', space=sflag, size = 0x4, scoped, tag = 'scoped memory for tpu_custom_call.1']
    #allocation7 [shape = 'u8[12288]{0}', space=vmem, size = 0x3000, scoped, tag = 'output window, operand 0, single buffered']
    %8 = vsyncpa [#allocation3], 0
    %9 = vsyncpa [#allocation6], 0
    %10 = vsyncpa [#allocation4], 0
    // Predicated region
    $region2: #{tpu_custom_call.1} parent=1 // pred_check
      _
    $region3: #{tpu_custom_call.1} parent=1 // pred_check_branch
      %12 = sbr.rel (0) target = $region5
    $region4: #{tpu_custom_call.1} parent=1 // pred_region
      %14 = vsyncadd [#allocation3], 0
      %s16 = sshll.u32 %s0, 4
      %s17 = int_to_ptr.hbm [resolvable:$true] %s16
      %s18 = sshll.u32 [#allocation2], 4
      %s19 = int_to_ptr.vmem [resolvable:$true] %s18
      %21 = dma.hbm_to_vmem [thread:$0]  %s17, 96, %s19, [#allocation3]
    $region5: #{tpu_custom_call.1} parent=1 // pred_fallthru
      _
    // Predicated region
    $region6: #{tpu_custom_call.1} parent=1 // pred_check
      _
    $region7: #{tpu_custom_call.1} parent=1 // pred_check_branch
      %23 = sbr.rel (0) target = $region9
    $region8: #{tpu_custom_call.1} parent=1 // pred_region
      %25 = vsyncadd [#allocation6], 0
      %s27 = sshll.u32 %s1, 4
      %s28 = int_to_ptr.hbm [resolvable:$true] %s27
      %s29 = sshll.u32 [#allocation5], 4
      %s30 = int_to_ptr.vmem [resolvable:$true] %s29
      %32 = dma.hbm_to_vmem [thread:$0]  %s28, 96, %s30, [#allocation6]
    $region9: #{tpu_custom_call.1} parent=1 // pred_fallthru
      _
    // Predicated region
    $region10: #{tpu_custom_call.1} parent=1 // pred_check
      _
    $region11: #{tpu_custom_call.1} parent=1 // pred_check_branch
      %34 = sbr.rel (0) target = $region13
    $region12: #{tpu_custom_call.1} parent=1 // pred_region
      _
    $region13: #{tpu_custom_call.1} parent=1 // pred_fallthru
      _
    // Predicated region
    $region14: #{tpu_custom_call.1} parent=1 // pred_check
      _
    $region15: #{tpu_custom_call.1} parent=1 // pred_check_branch
      %36 = sbr.rel (0) target = $region17
    $region16: #{tpu_custom_call.1} parent=1 // pred_region
      %38 = dma.done [#allocation3], 96
    $region17: #{tpu_custom_call.1} parent=1 // pred_fallthru
      _
    // Predicated region
    $region18: #{tpu_custom_call.1} parent=1 // pred_check
      _
    $region19: #{tpu_custom_call.1} parent=1 // pred_check_branch
      %40 = sbr.rel (0) target = $region21
    $region20: #{tpu_custom_call.1} parent=1 // pred_region
      %42 = dma.done [#allocation6], 96
    $region21: #{tpu_custom_call.1} parent=1 // pred_fallthru
      _
    %v43 = vld [vmem:[#allocation2] sm:$0x3f]
    %v44 = vld [vmem:[#allocation5] sm:$0x3f]
    %v45 = vsub.f32 %v43, %v44
    %v46 = vmul.f32 %v45, %v45
    %v47 = vld [vmem:[%s2] sm:$0x3]
    %49 = vset.pattern.permute.xlu0 0
    %50 = vperm.xlu0 %49, %v47
    %v51 = vpop.permute.xlu0 %50
    %v53 = vunpack.c.l.s4 269488144
    %v54 = vunpack.c.0.s8 %v53
    %v55 = vperm.slane %v51, %v54
    %v57 = vmul.f32 %v46, %v55
    %59 = vst [vmem:[#allocation1] ss:$4 sm:$0xff] %v57
    %v60 = vld.sshfl [vmem:[#allocation1] sm:$0xff pattern:$0x73625140]
    %v61 = vld.sshfl [vmem:[#allocation1 + $0x8] sm:$0xff pattern:$0x73625140]
    %v62 = vld.sshfl [vmem:[#allocation1 + $0x10] sm:$0xff pattern:$0x73625140]
    %vm66 = vcmask 1041408
    %v67 = vsel %vm66, %v60, 0.0
    %v68 = vrot.slane %v67, 4
    %v69 = vadd.f32 %v67, %v68
    %v70 = vrot.slane %v69, 2
    %v71 = vadd.f32 %v69, %v70
    %v72 = vrot.slane %v71, 1
    %v73 = vadd.f32 %v71, %v72
    %v74 = vsel %vm66, %v61, 0.0
    %v75 = vrot.slane %v74, 4
    %v76 = vadd.f32 %v74, %v75
    %v77 = vrot.slane %v76, 2
    %v78 = vadd.f32 %v76, %v77
    %v79 = vrot.slane %v78, 1
    %v80 = vadd.f32 %v78, %v79
    %v81 = vsel %vm66, %v62, 0.0
    %v82 = vrot.slane %v81, 4
    %v83 = vadd.f32 %v81, %v82
    %v84 = vrot.slane %v83, 2
    %v85 = vadd.f32 %v83, %v84
    %v86 = vrot.slane %v85, 1
    %v87 = vadd.f32 %v85, %v86
    %88 = vst [vmem:[#allocation7] sm:$0xff] %v73
    %89 = vst [vmem:[#allocation7 + $0x8] sm:$0xff] %v80
    %90 = vst [vmem:[#allocation7 + $0x10] sm:$0xff] %v87
    // Predicated region
    $region22: #{tpu_custom_call.1} parent=1 // pred_check
      _
    $region23: #{tpu_custom_call.1} parent=1 // pred_check_branch
      %92 = sbr.rel (0) target = $region25
    $region24: #{tpu_custom_call.1} parent=1 // pred_region
      %94 = vsyncadd [#allocation4], 0
      %s96 = sshll.u32 [#allocation7], 4
      %s97 = int_to_ptr.vmem [resolvable:$true] %s96
      %s98 = sshll.u32 %s3, 4
      %s99 = int_to_ptr.hbm [resolvable:$true] %s98
      %101 = dma.vmem_to_hbm [thread:$0]  %s97, 384, %s99, [#allocation4]
    $region25: #{tpu_custom_call.1} parent=1 // pred_fallthru
      _
    // Predicated region
    $region26: #{tpu_custom_call.1} parent=1 // pred_check
      _
    $region27: #{tpu_custom_call.1} parent=1 // pred_check_branch
      %103 = sbr.rel (0) target = $region29
    $region28: #{tpu_custom_call.1} parent=1 // pred_region
      %105 = dma.done [#allocation4], 384
    $region29: #{tpu_custom_call.1} parent=1 // pred_fallthru
      _
    %106 = vsyncpa [#allocation3], 1
    %107 = vsyncpa [#allocation6], 1
    %108 = vsyncpa [#allocation4], 1

</llo_original>
